<compile_context>
chip_gen: v7x
topology: tpu7x:2x2x1
jax: 0.10.0
libtpu: 0.0.40
codegen_flags: <defaults>
</compile_context>

<pallas_src>
import functools

import jax
import jax.numpy as jnp
from jax.experimental import pallas as pl
from jax.experimental.pallas import tpu as pltpu


_MAX_TILE_ROWS = 2048   # packed rows per grid step (8192 variables at pack=4)
_MIN_TILE_ROWS = 128    # keeps the output lane dim a full multiple of 128


def _round_up(x, m):
    return ((x + m - 1) // m) * m


def _packing(hidden):
    """Pack `pack` variables' hidden vectors side-by-side on the 128 lanes."""
    if hidden <= 128:
        hp = 1
        while hp < hidden:
            hp *= 2                      # power of two => divides 128
        return hp, 128 // hp, 128
    hp = _round_up(hidden, 128)
    return hp, 1, hp


def _choose_tiling(n_vars, pack, n_planes):
    """Row-tile size (packed rows) and padded row count."""
    rows_needed = max(-(-n_vars // pack), 1)
    rows_aligned = _round_up(rows_needed, _MIN_TILE_ROWS)
    min_tiles = 2 if n_planes == 1 else 1          # keep both v7x TCs busy
    tile_rows = _MAX_TILE_ROWS
    while tile_rows > _MIN_TILE_ROWS and tile_rows * min_tiles > rows_aligned:
        tile_rows //= 2
    rows_pad = _round_up(rows_needed, tile_rows)
    return tile_rows, rows_pad


def _assign_heads_kernel(avg_planes, dual, tanh_bf16,
                         lit_ref, w1_ref, b1_ref, w2_ref, b2_ref, pred_ref):
    """One grid step = one (plane, packed-row tile) of the AssignDecoder MLP.

    lit_ref : (2|1, T, W) f32   packed literal rows (W = pack*Hp = 128 lanes)
    w1_ref  : (W, W)  bf16      block-diagonal Linear(H,H) (0.5 folded for avg)
    b1_ref  : (1, W)  f32       bias tiled across the pack groups
    w2_ref  : (P8, W) f32       row-block form of Linear(H,1), P8 = pad(pack,8)
    b2_ref  : (1, 1)  f32
    pred_ref: (1, P8, T) f32    lane-dense predictions (vars on the lane axis)
    """
    if avg_planes:                       # 'avg_in': f32 plane add, single cast
        x = (lit_ref[0] + lit_ref[1]).astype(w1_ref.dtype)
    else:                                # single plane (selected by BlockSpec)
        x = lit_ref[0].astype(w1_ref.dtype)

    # Linear(H,H) + bias + Tanh on fully packed 128-lane operands.
    acc = jnp.dot(x, w1_ref[...], preferred_element_type=jnp.float32)
    acc = acc + b1_ref[...]
    if tanh_bf16:                        # optional v6e/v7x EUP-throughput mode
        h = jnp.tanh(acc.astype(jnp.bfloat16)).astype(jnp.float32)
    else:
        h = jnp.tanh(acc)                                    # (T, W) f32

    # Linear(H,1): logits (P8, T) = w2 (P8, W) . h (T, W) contracted on lanes
    # -> lane-dense logits, no masked partial stores.
    logits = jax.lax.dot_general(
        w2_ref[...], h, (((1,), (1,)), ((), ())),
        preferred_element_type=jnp.float32) + b2_ref[...]

    # round(sigmoid(x)) == (x > 0)   (round-half-to-even makes the x==0 tie 0)
    pos_pred = (logits > 0.0).astype(jnp.float32)
    if dual:                             # plane 1 carries the inverted head
        inv = (pl.program_id(0) == 1).astype(jnp.float32)
        pred_ref[0] = inv + (1.0 - 2.0 * inv) * pos_pred
    else:
        pred_ref[0] = pos_pred


def assign_decoder_forward(state, params, *, L_aggregate="avg_in",
                           env_mode="train", A_gt=None,
                           compute_dtype=jnp.bfloat16, tanh_bf16=False):
    """Mirrors AssignDecoder.forward for the A_gt=None (inference) path."""
    L_emb = state["literal_emb"]                   # (1, 2*n_vars, H) f32
    hidden = L_emb.shape[-1]
    n_vars = L_emb.shape[1] // 2
    # torch: reshape(1, 2, n_vars, H); plane 0 = positive, plane 1 = negative.
    lit2 = L_emb.reshape(2, n_vars, hidden)

    if L_aggregate == "avg_in":
        mode = "avg"
    elif L_aggregate == "p_only":
        mode = "pos" if env_mode == "train" else "dual"
    elif L_aggregate == "dual":
        mode = "dual"
    else:
        raise ValueError(f"unknown L_aggregate: {L_aggregate}")

    n_planes = 2 if mode == "dual" else 1
    hp, pack, W = _packing(hidden)
    tile_rows, rows_pad = _choose_tiling(n_vars, pack, n_planes)
    n_tiles = rows_pad // tile_rows
    n_vars_pad = rows_pad * pack
    packs_out = _round_up(pack, 8)                 # sublane-aligned logit rows

    # ---- weight prep (tiny, built once per call) --------------------------
    w1, b1, w2, b2 = params
    w1p = jnp.zeros((hp, hp), jnp.float32).at[:hidden, :hidden].set(
        w1.astype(jnp.float32))
    if mode == "avg":
        w1p = w1p * 0.5                            # fold the plane mean into w1
    w1_bd = jnp.kron(jnp.eye(pack, dtype=jnp.float32), w1p).astype(compute_dtype)
    b1p = jnp.zeros((hp,), jnp.float32).at[:hidden].set(b1.astype(jnp.float32))
    b1_t = jnp.tile(b1p.reshape(1, hp), (1, pack))                 # (1, W)
    w2p = jnp.zeros((hp,), jnp.float32).at[:hidden].set(
        w2.reshape(hidden).astype(jnp.float32))
    w2_nt = jnp.kron(jnp.eye(pack, dtype=jnp.float32), w2p.reshape(1, hp))
    w2_nt = jnp.pad(w2_nt, ((0, packs_out - pack), (0, 0)))        # (P8, W)
    b2r = b2.reshape(1, 1).astype(jnp.float32)

    # ---- literal prep: keep f32 in HBM (cast to bf16 inside the kernel) ----
    lit_in = lit2[:1] if mode == "pos" else lit2   # 'pos' never touches plane 1
    planes_in = lit_in.shape[0]
    if n_vars_pad != n_vars or hp != hidden:
        lit_in = jnp.pad(lit_in, ((0, 0), (0, n_vars_pad - n_vars),
                                  (0, hp - hidden)))
    lit_in = lit_in.reshape(planes_in, rows_pad, W)   # contiguous lane packing

    if mode == "avg":       # both planes per tile, averaged in-kernel
        lit_spec = pl.BlockSpec((2, tile_rows, W), lambda p, i: (0, i, 0))
    elif mode == "pos":     # only the positive plane exists / is DMA'd
        lit_spec = pl.BlockSpec((1, tile_rows, W), lambda p, i: (0, i, 0))
    else:                   # dual: plane selected by grid axis 0
        lit_spec = pl.BlockSpec((1, tile_rows, W), lambda p, i: (p, i, 0))

    kernel = functools.partial(_assign_heads_kernel,
                               mode == "avg", mode == "dual", tanh_bf16)
    pred = pl.pallas_call(
        kernel,
        out_shape=jax.ShapeDtypeStruct((n_planes, packs_out, rows_pad),
                                       jnp.float32),
        grid=(n_planes, n_tiles),
        in_specs=[
            lit_spec,
            pl.BlockSpec((W, W), lambda p, i: (0, 0)),          # w1 resident
            pl.BlockSpec((1, W), lambda p, i: (0, 0)),          # b1
            pl.BlockSpec((packs_out, W), lambda p, i: (0, 0)),  # w2 row blocks
            pl.BlockSpec((1, 1), lambda p, i: (0, 0)),          # b2
        ],
        out_specs=pl.BlockSpec((1, packs_out, tile_rows), lambda p, i: (p, 0, i)),
        compiler_params=pltpu.CompilerParams(
            dimension_semantics=("parallel", "parallel")),
    )(lit_in, w1_bd, b1_t, w2_nt, b2r)

    # (n_planes, P8, rows_pad) -> (n_planes, n_vars): tiny wrapper reassembly
    # of the packed logit layout (variable v lives at [plane, v % pack, v // pack]).
    pred = pred[:, :pack, :]
    pred = jnp.transpose(pred, (0, 2, 1)).reshape(n_planes, rows_pad * pack)
    pred = pred[:, :n_vars]
    A_pred = [pred[p:p + 1] for p in range(n_planes)]

    # TODO(synk): sat_loss / precheck_VA / min_VA_loss / res_sat_loss require
    # the external SAT environment (env.is_satisfying, formula.certificate,
    # last_logp); only the A_gt=None inference path is implemented here.
    return {"A_pred": A_pred}


# ----------------------------------------------------------------------------
# Pure-JAX reference + self-checks
# ----------------------------------------------------------------------------

def _make_params(key, hidden):
    """PyTorch-Linear-style init. Weights stored as (in, out)."""
    k1, k2, k3, k4 = jax.random.split(key, 4)
    bound = 1.0 / (hidden ** 0.5)
    w1 = jax.random.uniform(k1, (hidden, hidden), jnp.float32, -bound, bound)
    b1 = jax.random.uniform(k2, (hidden,), jnp.float32, -bound, bound)
    w2 = jax.random.uniform(k3, (hidden, 1), jnp.float32, -bound, bound)
    b2 = jax.random.uniform(k4, (1,), jnp.float32, -bound, bound)
    return w1, b1, w2, b2


def _reference_heads(literal_emb, params, heads, compute_dtype):
    """f32 reference mirroring the kernel's quantization points."""
    w1, b1, w2, b2 = params
    hidden = literal_emb.shape[-1]
    n_vars = literal_emb.shape[1] // 2
    lit2 = literal_emb.reshape(2, n_vars, hidden)
    b1r = b1.reshape(1, hidden).astype(jnp.float32)
    w2c = w2.reshape(hidden, 1).astype(jnp.float32)
    b2r = b2.reshape(1, 1).astype(jnp.float32)
    out = []
    for agg, invert in heads:
        if agg == "avg":
            x = lit2[0] + lit2[1]                      # f32 sum, 0.5 in w1
            w1_eff = w1.astype(jnp.float32) * 0.5
        elif agg == "pos":
            x, w1_eff = lit2[0], w1.astype(jnp.float32)
        else:
            x, w1_eff = lit2[1], w1.astype(jnp.float32)
        xq = x.astype(compute_dtype).astype(jnp.float32)
        w1q = w1_eff.astype(compute_dtype).astype(jnp.float32)
        h = jnp.tanh(xq @ w1q + b1r)
        logits = (h @ w2c + b2r).reshape(1, n_vars)
        pred = jnp.round(jax.nn.sigmoid(logits))
        if invert:
            pred = 1.0 - pred
        out.append((logits, pred))
    return out


def _check(state, params, L_aggregate, env_mode, heads,
           compute_dtype=jnp.bfloat16, tol=5e-2):
    out = assign_decoder_forward(state, params, L_aggregate=L_aggregate,
                                 env_mode=env_mode, A_gt=None,
                                 compute_dtype=compute_dtype)
    preds = [jax.block_until_ready(p) for p in out["A_pred"]]
    refs = _reference_heads(state["literal_emb"], params, heads, compute_dtype)
    n_vars = state["literal_emb"].shape[1] // 2
    assert len(preds) == len(refs), (len(preds), len(refs))
    for pred, (ref_logits, ref_pred) in zip(preds, refs):
        assert pred.shape == (1, n_vars), pred.shape
        # Allow disagreement only in the round(sigmoid) tie region (|logit|~0),
        # where bf16 / accumulation-order noise can legitimately flip the bit.
        ok = (pred == ref_pred) | (jnp.abs(ref_logits) < tol)
        assert bool(jnp.all(ok)), f"prediction mismatch: {L_aggregate}/{env_mode}"


if __name__ == "__main__":
    hidden = 32                       # opt.hidden_size
    key = jax.random.PRNGKey(0)
    kp, kx1, kx2, kx3 = jax.random.split(key, 4)
    params = _make_params(kp, hidden)

    # Tiny problem: exercises heavy lane/row padding, single-tile grid.
    n_small = 8
    state_small = {"literal_emb": jax.random.normal(
        kx1, (1, 2 * n_small, hidden), jnp.float32), "last_logp": None}
    _check(state_small, params, "dual", "train", [("pos", False), ("neg", True)])
    _check(state_small, params, "avg_in", "train", [("avg", False)])
    _check(state_small, params, "p_only", "train", [("pos", False)])
    _check(state_small, params, "p_only", "eval", [("pos", False), ("neg", True)])

    # Medium problem: 384 vars pad to 512, one 128-row packed tile per plane.
    n_mid = 384
    state_mid = {"literal_emb": jax.random.normal(
        kx2, (1, 2 * n_mid, hidden), jnp.float32), "last_logp": None}
    _check(state_mid, params, "dual", "train", [("pos", False), ("neg", True)])
    _check(state_mid, params, "avg_in", "train", [("avg", False)])

    # Larger irregular problem: multi-tile grid (+ megacore split when 1 plane).
    n_big = 700
    state_big = {"literal_emb": jax.random.normal(
        kx3, (1, 2 * n_big, hidden), jnp.float32), "last_logp": None}
    _check(state_big, params, "avg_in", "train", [("avg", False)])
    _check(state_big, params, "dual", "train", [("pos", False), ("neg", True)])

    print("KERNEL_OK")
</pallas_src>

<mosaic_0001>
module attributes {stable_mosaic.version = 11 : i64} {
  func.func @_assign_heads_kernel(%arg0: i32, %arg1: i32, %arg2: memref<1x128x128xf32, #tpu.memory_space<vmem>>, %arg3: memref<128x128xbf16, #tpu.memory_space<vmem>>, %arg4: memref<1x128xf32, #tpu.memory_space<vmem>>, %arg5: memref<8x128xf32, #tpu.memory_space<vmem>>, %arg6: memref<1x1xf32, #tpu.memory_space<vmem>>, %arg7: memref<1x8x128xf32, #tpu.memory_space<vmem>>) attributes {dimension_semantics = [#tpu.dimension_semantics<parallel>, #tpu.dimension_semantics<parallel>], iteration_bounds = array<i64: 2, 1>, scalar_prefetch = 0 : i64, scratch_operands = 0 : i64, tpu.core_type = #tpu.core_type<tc>, window_params = [{transform_indices = @transform_0, window_bounds = array<i64: 1, 128, 128>}, {pipeline_mode = #tpu.pipeline_mode<synchronous>, transform_indices = @transform_1, window_bounds = array<i64: 128, 128>}, {pipeline_mode = #tpu.pipeline_mode<synchronous>, transform_indices = @transform_2, window_bounds = array<i64: 1, 128>}, {pipeline_mode = #tpu.pipeline_mode<synchronous>, transform_indices = @transform_3, window_bounds = array<i64: 8, 128>}, {pipeline_mode = #tpu.pipeline_mode<synchronous>, transform_indices = @transform_4, window_bounds = array<i64: 1, 1>}, {transform_indices = @transform_5, window_bounds = array<i64: 1, 8, 128>}]} {
    %c0 = arith.constant 0 : index
    %c0_0 = arith.constant 0 : index
    %c0_1 = arith.constant 0 : index
    %0 = vector.load %arg2[%c0, %c0_0, %c0_1] : memref<1x128x128xf32, #tpu.memory_space<vmem>>, vector<1x128x128xf32>
    %1 = vector.shape_cast %0 : vector<1x128x128xf32> to vector<128x128xf32>
    %2 = arith.truncf %1 : vector<128x128xf32> to vector<128x128xbf16>
    %c0_2 = arith.constant 0 : index
    %c0_3 = arith.constant 0 : index
    %3 = vector.load %arg3[%c0_2, %c0_3] : memref<128x128xbf16, #tpu.memory_space<vmem>>, vector<128x128xbf16>
    %cst = arith.constant dense<0.000000e+00> : vector<128x128xf32>
    %4 = tpu.matmul %2, %3, %cst {dimension_numbers = #tpu.dot_dimension_numbers<[1], [0], [0], [1], [0, 0, 1, 1], [], []>} : vector<128x128xbf16>, vector<128x128xbf16>, vector<128x128xf32> -> vector<128x128xf32>
    %c0_4 = arith.constant 0 : index
    %c0_5 = arith.constant 0 : index
    %5 = vector.load %arg4[%c0_4, %c0_5] : memref<1x128xf32, #tpu.memory_space<vmem>>, vector<1x128xf32>
    %6 = vector.broadcast %5 : vector<1x128xf32> to vector<128x128xf32>
    %7 = arith.addf %4, %6 : vector<128x128xf32>
    %8 = math.tanh %7 : vector<128x128xf32>
    %c0_6 = arith.constant 0 : index
    %c0_7 = arith.constant 0 : index
    %9 = vector.load %arg5[%c0_6, %c0_7] : memref<8x128xf32, #tpu.memory_space<vmem>>, vector<8x128xf32>
    %cst_8 = arith.constant dense<0.000000e+00> : vector<8x128xf32>
    %10 = tpu.matmul %9, %8, %cst_8 {dimension_numbers = #tpu.dot_dimension_numbers<[1], [1], [0], [0], [0, 0, 1, 0], [], []>} : vector<8x128xf32>, vector<128x128xf32>, vector<8x128xf32> -> vector<8x128xf32>
    %c0_9 = arith.constant 0 : index
    %c0_10 = arith.constant 0 : index
    %11 = vector.load %arg6[%c0_9, %c0_10] : memref<1x1xf32, #tpu.memory_space<vmem>>, vector<1x1xf32>
    %12 = vector.broadcast %11 : vector<1x1xf32> to vector<8x128xf32>
    %13 = arith.addf %10, %12 : vector<8x128xf32>
    %cst_11 = arith.constant 0.000000e+00 : f32
    %14 = vector.broadcast %cst_11 : f32 to vector<8x128xf32>
    %15 = arith.cmpf ogt, %13, %14 : vector<8x128xf32>
    %16 = arith.extui %15 : vector<8x128xi1> to vector<8x128xi32>
    %17 = arith.sitofp %16 : vector<8x128xi32> to vector<8x128xf32>
    %c1_i32 = arith.constant 1 : i32
    %18 = arith.cmpi eq, %arg0, %c1_i32 : i32
    %19 = arith.extui %18 : i1 to i32
    %20 = arith.sitofp %19 : i32 to f32
    %cst_12 = arith.constant 2.000000e+00 : f32
    %21 = arith.mulf %cst_12, %20 : f32
    %cst_13 = arith.constant 1.000000e+00 : f32
    %22 = arith.subf %cst_13, %21 : f32
    %23 = vector.broadcast %22 : f32 to vector<8x128xf32>
    %24 = arith.mulf %23, %17 : vector<8x128xf32>
    %25 = vector.broadcast %20 : f32 to vector<8x128xf32>
    %26 = arith.addf %25, %24 : vector<8x128xf32>
    %c0_14 = arith.constant 0 : index
    %c0_15 = arith.constant 0 : index
    %c0_16 = arith.constant 0 : index
    %27 = vector.load %arg7[%c0_14, %c0_15, %c0_16] : memref<1x8x128xf32, #tpu.memory_space<vmem>>, vector<1x8x128xf32>
    %28 = vector.shape_cast %27 : vector<1x8x128xf32> to vector<8x128xf32>
    %29 = vector.shape_cast %26 : vector<8x128xf32> to vector<1x8x128xf32>
    tpu.vector_store %arg7[%c0_14, %c0_15, %c0_16], %29 {strides = array<i32>} : memref<1x8x128xf32, #tpu.memory_space<vmem>>, vector<1x8x128xf32>,
    return
  }
  func.func @transform_0(%arg0: i32, %arg1: i32) -> (i32, i32, i32) {
    %c0_i32 = arith.constant 0 : i32
    %c0_i32_0 = arith.constant 0 : i32
    return %arg0, %arg1, %c0_i32 : i32, i32, i32
  }
  func.func @transform_1(%arg0: i32, %arg1: i32) -> (i32, i32) {
    %c0_i32 = arith.constant 0 : i32
    %c0_i32_0 = arith.constant 0 : i32
    %c0_i32_1 = arith.constant 0 : i32
    return %c0_i32, %c0_i32_0 : i32, i32
  }
  func.func @transform_2(%arg0: i32, %arg1: i32) -> (i32, i32) {
    %c0_i32 = arith.constant 0 : i32
    %c0_i32_0 = arith.constant 0 : i32
    %c0_i32_1 = arith.constant 0 : i32
    return %c0_i32, %c0_i32_0 : i32, i32
  }
  func.func @transform_3(%arg0: i32, %arg1: i32) -> (i32, i32) {
    %c0_i32 = arith.constant 0 : i32
    %c0_i32_0 = arith.constant 0 : i32
    %c0_i32_1 = arith.constant 0 : i32
    return %c0_i32, %c0_i32_0 : i32, i32
  }
  func.func @transform_4(%arg0: i32, %arg1: i32) -> (i32, i32) {
    %c0_i32 = arith.constant 0 : i32
    %c0_i32_0 = arith.constant 0 : i32
    %c0_i32_1 = arith.constant 0 : i32
    return %c0_i32, %c0_i32_0 : i32, i32
  }
  func.func @transform_5(%arg0: i32, %arg1: i32) -> (i32, i32, i32) {
    %c0_i32 = arith.constant 0 : i32
    %c0_i32_0 = arith.constant 0 : i32
    return %arg0, %c0_i32, %arg1 : i32, i32, i32
  }
}

</mosaic_0001>

<llo_original>
// kernel: tpu_custom_call.1
$region0: #{tpu_custom_call.1}
  #allocation0 [shape = 'u32[]', space=smem, size = 0x4, offset = 0x4, fixed_abs, tag = 'smem constant byte address 0x4 - core index']
  #allocation1 [shape = 'u32[144,128]{1,0:T(1,128)}', space=vmem, size = 0x12000, scoped, tag = 'internal scratch']
  #allocation2 [shape = 'f32[1,1]{1,0:T(1,128)S(1)}', space=vmem, size = 0x200, scoped, tag = 'scoped memory for tpu_custom_call.1']
  %s0 = inlined_call_operand.hbm [shape: f32[2,128,128], index: 0, kind: input, shape index: {}]
  %s1 = inlined_call_operand.hbm [shape: bf16[128,128], index: 1, kind: input, shape index: {}]
  %s2 = inlined_call_operand.vmem [shape: f32[1,128], index: 2, kind: input, shape index: {}]
  %s3 = inlined_call_operand.vmem [shape: f32[8,128], index: 3, kind: input, shape index: {}]
  %s4 = inlined_call_operand.<no memory space> [shape: f32[1,1], index: 4, kind: input, shape index: {}]
  %s5 = inlined_call_operand.hbm [shape: f32[2,8,128], index: 5, kind: output, shape index: {}]
  %s6 = sld [smem:[#allocation0]]
  $region61: #{tpu_custom_call.1} parent=0
    _
  %s8 = ssub.s32 1, %s6
  %s9 = scalar_select 0, %s8, %s6
  %v10 = vstv %s4
  %11 = vst [vmem:[#allocation2] sm:$0x1] %v10
  $region1: #{tpu_custom_call.1} parent=0
    #allocation3 [shape = 'u8[131072]{0}', space=vmem, size = 0x20000, scoped, tag = 'input window, operand 0']
    #allocation4 [shape = 's32[2]{0}', space=sflag, size = 0x8, scoped, tag = 'scoped memory for tpu_custom_call.1']
    #allocation5 [shape = 's32[2]{0}', space=sflag, size = 0x8, scoped, tag = 'scoped memory for tpu_custom_call.1']
    #allocation6 [shape = 'u8[32768]{0}', space=vmem, size = 0x8000, scoped, tag = 'input window, operand 1, single buffered']
    #allocation7 [shape = 's32[1]{0}', space=sflag, size = 0x4, scoped, tag = 'scoped memory for tpu_custom_call.1']
    #allocation8 [shape = 'u8[8192]{0}', space=vmem, size = 0x2000, scoped, tag = 'output window, operand 0']
    %12 = vsyncpa [#allocation4], 0
    %s13 = scalar_lea.sflag [#allocation4], 1
    %14 = vsyncpa %s13, 0
    %15 = vsyncpa [#allocation7], 0
    %16 = vsyncpa [#allocation5], 0
    %s17 = scalar_lea.sflag [#allocation5], 1
    %18 = vsyncpa %s17, 0
    loop: start=0, step=1, limit=4
    $region2: #{tpu_custom_call.1} parent=1 // loop_pre_header
      _
    $region3: #{tpu_custom_call.1} parent=1 // loop_header
      %s20 = sphi 0, %s24
      %p21 = scmp.ge.s32.totalorder %s20, 4
      %s27 = sphi 0, %s39
      %s28 = sphi 0, %s35
      %s29 = sphi 0, %s27
      %s30 = sphi 0, %s28
      %s31 = sphi 0, %s29
      %s32 = sphi 0, %s30
      %s44 = sphi 0, %s46
      %s47 = sphi 0, %s44
      %s48 = sphi 0, %s47
      %s64 = sphi 0, %s48
      %s68 = sphi 0, %s68
      %s70 = sphi 0, %s68
      %s71 = sphi 0, %s70
      %s85 = sphi 0, %s71
      %s89 = sphi 0, %s89
      %s91 = sphi 0, %s89
      %s92 = sphi 0, %s91
      %s106 = sphi 0, %s92
      %s110 = sphi 0, %s110
      %s112 = sphi 0, %s110
      %s113 = sphi 0, %s112
      %s127 = sphi 0, %s113
      %s131 = sphi 0, %s131
      %s133 = sphi 0, %s131
      %s134 = sphi 0, %s133
      %s148 = sphi 0, %s134
      %s156 = sphi 0, %s158
      %s159 = sphi 0, %s156
      %s160 = sphi 0, %s159
      %s176 = sphi 0, %s160
    $region4: #{tpu_custom_call.1} parent=1 // loop_header_branch
      %23 = sbr.rel (%p21) target = $region8
    $region5: #{tpu_custom_call.1} parent=1 // loop_body
      %s25 = ssub.s32 %s20, 1
      %s26 = ssub.s32 %s20, 2
      %s33 = sadd.s32 1, %s28
      %p34 = scmp.ge.s32.totalorder %s33, 1
      %s35 = scalar_select %p34, 0, %s33
      %s36 = sadd.s32 1, %s27
      %s37 = scalar_select %p34, %s36, %s27
      %p38 = scmp.ge.s32.totalorder %s37, 2
      %s39 = scalar_select %p38, 0, %s37
      %s40 = ssub.s32 %s27, %s39
      %s41 = ssub.s32 %s28, %s35
      %s42 = sor.u32 %s40, %s41
      %p43 = scmp.eq.s32.totalorder %s42, 0
      %s45 = sadd.s32 %s44, 1
      %s46 = scalar_select %p43, %s44, %s45
      %p49 = pneg %p43
      %p50 = scmp.eq.s32.totalorder %s20, 1
      %p51 = por %p49, %p50
      %p52 = scmp.ne.s32.totalorder %s44, %s47
      %p53 = scmp.eq.s32.totalorder %s20, 0
      %p54 = por %p52, %p53
      %p55 = scmp.ne.s32.totalorder %s44, %s47
      %p56 = scmp.eq.s32.totalorder %s25, 1
      %p57 = por %p55, %p56
      %p58 = scmp.ne.s32.totalorder %s47, %s48
      %p59 = scmp.eq.s32.totalorder %s25, 0
      %p60 = por %p58, %p59
      %p61 = scmp.ne.s32.totalorder %s47, %s48
      %p62 = scmp.eq.s32.totalorder %s26, 1
      %p63 = por %p61, %p62
      %p65 = scmp.ne.s32.totalorder %s48, %s64
      %p66 = scmp.eq.s32.totalorder %s26, 0
      %p67 = por %p65, %p66
      %s69 = sadd.s32 %s68, 1
      %p72 = scmp.eq.s32.totalorder %s20, 1
      %p73 = scmp.ne.s32.totalorder %s68, %s70
      %p74 = scmp.eq.s32.totalorder %s20, 0
      %p75 = por %p73, %p74
      %p76 = scmp.ne.s32.totalorder %s68, %s70
      %p77 = scmp.eq.s32.totalorder %s25, 1
      %p78 = por %p76, %p77
      %p79 = scmp.ne.s32.totalorder %s70, %s71
      %p80 = scmp.eq.s32.totalorder %s25, 0
      %p81 = por %p79, %p80
      %p82 = scmp.ne.s32.totalorder %s70, %s71
      %p83 = scmp.eq.s32.totalorder %s26, 1
      %p84 = por %p82, %p83
      %p86 = scmp.ne.s32.totalorder %s71, %s85
      %p87 = scmp.eq.s32.totalorder %s26, 0
      %p88 = por %p86, %p87
      %s90 = sadd.s32 %s89, 1
      %p93 = scmp.eq.s32.totalorder %s20, 1
      %p94 = scmp.ne.s32.totalorder %s89, %s91
      %p95 = scmp.eq.s32.totalorder %s20, 0
      %p96 = por %p94, %p95
      %p97 = scmp.ne.s32.totalorder %s89, %s91
      %p98 = scmp.eq.s32.totalorder %s25, 1
      %p99 = por %p97, %p98
      %p100 = scmp.ne.s32.totalorder %s91, %s92
      %p101 = scmp.eq.s32.totalorder %s25, 0
      %p102 = por %p100, %p101
      %p103 = scmp.ne.s32.totalorder %s91, %s92
      %p104 = scmp.eq.s32.totalorder %s26, 1
      %p105 = por %p103, %p104
      %p107 = scmp.ne.s32.totalorder %s92, %s106
      %p108 = scmp.eq.s32.totalorder %s26, 0
      %p109 = por %p107, %p108
      %s111 = sadd.s32 %s110, 1
      %p114 = scmp.eq.s32.totalorder %s20, 1
      %p115 = scmp.ne.s32.totalorder %s110, %s112
      %p116 = scmp.eq.s32.totalorder %s20, 0
      %p117 = por %p115, %p116
      %p118 = scmp.ne.s32.totalorder %s110, %s112
      %p119 = scmp.eq.s32.totalorder %s25, 1
      %p120 = por %p118, %p119
      %p121 = scmp.ne.s32.totalorder %s112, %s113
      %p122 = scmp.eq.s32.totalorder %s25, 0
      %p123 = por %p121, %p122
      %p124 = scmp.ne.s32.totalorder %s112, %s113
      %p125 = scmp.eq.s32.totalorder %s26, 1
      %p126 = por %p124, %p125
      %p128 = scmp.ne.s32.totalorder %s113, %s127
      %p129 = scmp.eq.s32.totalorder %s26, 0
      %p130 = por %p128, %p129
      %s132 = sadd.s32 %s131, 1
      %p135 = scmp.eq.s32.totalorder %s20, 1
      %p136 = scmp.ne.s32.totalorder %s131, %s133
      %p137 = scmp.eq.s32.totalorder %s20, 0
      %p138 = por %p136, %p137
      %p139 = scmp.ne.s32.totalorder %s131, %s133
      %p140 = scmp.eq.s32.totalorder %s25, 1
      %p141 = por %p139, %p140
      %p142 = scmp.ne.s32.totalorder %s133, %s134
      %p143 = scmp.eq.s32.totalorder %s25, 0
      %p144 = por %p142, %p143
      %p145 = scmp.ne.s32.totalorder %s133, %s134
      %p146 = scmp.eq.s32.totalorder %s26, 1
      %p147 = por %p145, %p146
      %p149 = scmp.ne.s32.totalorder %s134, %s148
      %p150 = scmp.eq.s32.totalorder %s26, 0
      %p151 = por %p149, %p150
      %s152 = ssub.s32 %s27, %s39
      %s153 = ssub.s32 %s28, %s35
      %s154 = sor.u32 %s152, %s153
      %p155 = scmp.eq.s32.totalorder %s154, 0
      %s157 = sadd.s32 %s156, 1
      %s158 = scalar_select %p155, %s156, %s157
      %p161 = pneg %p155
      %p162 = scmp.eq.s32.totalorder %s20, 1
      %p163 = por %p161, %p162
      %p164 = scmp.ne.s32.totalorder %s156, %s159
      %p165 = scmp.eq.s32.totalorder %s20, 0
      %p166 = por %p164, %p165
      %p167 = scmp.ne.s32.totalorder %s156, %s159
      %p168 = scmp.eq.s32.totalorder %s25, 1
      %p169 = por %p167, %p168
      %p170 = scmp.ne.s32.totalorder %s159, %s160
      %p171 = scmp.eq.s32.totalorder %s25, 0
      %p172 = por %p170, %p171
      %p173 = scmp.ne.s32.totalorder %s159, %s160
      %p174 = scmp.eq.s32.totalorder %s26, 1
      %p175 = por %p173, %p174
      %p177 = scmp.ne.s32.totalorder %s160, %s176
      %p178 = scmp.eq.s32.totalorder %s26, 0
      %p179 = por %p177, %p178
      %p180 = scmp.le.s32.totalorder 1, %s20
      %p181 = scmp.lt.s32.totalorder %s20, 3
      %p182 = pnand %p180, %p181
      %p183 = pneg %p182
      // Predicated region
      $region9: #{tpu_custom_call.1} parent=5 // pred_check
        _
      $region10: #{tpu_custom_call.1} parent=5 // pred_check_branch
        %185 = sbr.rel (%p182) target = $region12
      $region11: #{tpu_custom_call.1} parent=5 // pred_region
        %s186 = ssub.s32 %s20, 1
        // Predicated region
        $region13: #{tpu_custom_call.1} parent=11 // pred_check
          %p187 = pneg %p81
        $region14: #{tpu_custom_call.1} parent=11 // pred_check_branch
          %189 = sbr.rel (%p187) target = $region16
        $region15: #{tpu_custom_call.1} parent=11 // pred_region
          %s191 = ssub.s32 1024, 1024
          %192 = vsyncadd [#allocation7], %s191
          %s193 = sshll.u32 [#allocation6], 4
          %s194 = int_to_ptr.vmem [resolvable:$true] %s193
          %199 = dma.hbm_to_vmem [thread:$0]  %s1, 1024, %s194, [#allocation7], 64, 64, 4
        $region16: #{tpu_custom_call.1} parent=11 // pred_fallthru
          _
        // Predicated region
        $region17: #{tpu_custom_call.1} parent=11 // pred_check
          %p200 = pneg %p102
        $region18: #{tpu_custom_call.1} parent=11 // pred_check_branch
          %202 = sbr.rel (%p200) target = $region20
        $region19: #{tpu_custom_call.1} parent=11 // pred_region
          _
        $region20: #{tpu_custom_call.1} parent=11 // pred_fallthru
          _
        // Predicated region
        $region21: #{tpu_custom_call.1} parent=11 // pred_check
          %p203 = pneg %p123
        $region22: #{tpu_custom_call.1} parent=11 // pred_check_branch
          %205 = sbr.rel (%p203) target = $region24
        $region23: #{tpu_custom_call.1} parent=11 // pred_region
          _
        $region24: #{tpu_custom_call.1} parent=11 // pred_fallthru
          _
        // Predicated region
        $region25: #{tpu_custom_call.1} parent=11 // pred_check
          %p206 = pneg %p144
        $region26: #{tpu_custom_call.1} parent=11 // pred_check_branch
          %208 = sbr.rel (%p206) target = $region28
        $region27: #{tpu_custom_call.1} parent=11 // pred_region
          _
        $region28: #{tpu_custom_call.1} parent=11 // pred_fallthru
          _
      $region12: #{tpu_custom_call.1} parent=5 // pred_fallthru
        _
      %p209 = scmp.lt.s32.totalorder %s20, 2
      // Predicated region
      $region29: #{tpu_custom_call.1} parent=5 // pred_check
        %p210 = pneg %p209
      $region30: #{tpu_custom_call.1} parent=5 // pred_check_branch
        %212 = sbr.rel (%p210) target = $region32
      $region31: #{tpu_custom_call.1} parent=5 // pred_region
        // Predicated region
        $region33: #{tpu_custom_call.1} parent=31 // pred_check
          %p213 = pneg %p54
        $region34: #{tpu_custom_call.1} parent=31 // pred_check_branch
          %215 = sbr.rel (%p213) target = $region36
        $region35: #{tpu_custom_call.1} parent=31 // pred_region
          %s216 = sand.u32 %s44, 1
          %s217 = scalar_lea.sflag [#allocation4], %s216
          %s218 = sand.u32 %s44, 1
          %s219 = smul.addr %s218, 128
          %s220 = scalar_lea.vmem [#allocation3], %s219
          %s221 = smul.u32 16, %s28
          %s223 = ssub.s32 2048, 2048
          %224 = vsyncadd %s217, %s223
          %s225 = smul.addr %s27, 16
          %s226 = sadd.s32 %s221, %s225
          %s227 = smul.addr %s226, 128
          %s228 = scalar_lea.hbm %s0, %s227
          %s229 = sshll.u32 %s220, 4
          %s230 = int_to_ptr.vmem [resolvable:$true] %s229
          %235 = dma.hbm_to_vmem [thread:$0]  %s228, 2048, %s230, %s217, 128, 128, 8
        $region36: #{tpu_custom_call.1} parent=31 // pred_fallthru
          _
      $region32: #{tpu_custom_call.1} parent=5 // pred_fallthru
        _
      %p236 = scmp.le.s32.totalorder 1, %s20
      %p237 = scmp.lt.s32.totalorder %s20, 3
      %p238 = pnand %p236, %p237
      %p239 = pneg %p238
      // Predicated region
      $region37: #{tpu_custom_call.1} parent=5 // pred_check
        _
      $region38: #{tpu_custom_call.1} parent=5 // pred_check_branch
        %241 = sbr.rel (%p238) target = $region40
      $region39: #{tpu_custom_call.1} parent=5 // pred_region
        %s242 = ssub.s32 %s20, 1
        %s243 = sand.u32 %s47, 1
        %s244 = scalar_lea.sflag [#allocation4], %s243
        %s245 = sand.u32 %s47, 1
        %s246 = smul.addr %s245, 128
        %s247 = scalar_lea.vmem [#allocation3], %s246
        // Predicated region
        $region41: #{tpu_custom_call.1} parent=39 // pred_check
          %p248 = pneg %p60
        $region42: #{tpu_custom_call.1} parent=39 // pred_check_branch
          %250 = sbr.rel (%p248) target = $region44
        $region43: #{tpu_custom_call.1} parent=39 // pred_region
          %251 = dma.done %s244, 2048
        $region44: #{tpu_custom_call.1} parent=39 // pred_fallthru
          _
        // Predicated region
        $region45: #{tpu_custom_call.1} parent=39 // pred_check
          %p252 = pneg %p81
        $region46: #{tpu_custom_call.1} parent=39 // pred_check_branch
          %254 = sbr.rel (%p252) target = $region48
        $region47: #{tpu_custom_call.1} parent=39 // pred_region
          %255 = dma.done [#allocation7], 1024
        $region48: #{tpu_custom_call.1} parent=39 // pred_fallthru
          _
        %s256 = sand.u32 %s47, 1
        %s257 = scalar_lea.sflag [#allocation4], %s256
        %s258 = sand.u32 %s47, 1
        %s259 = smul.addr %s258, 128
        %s260 = scalar_lea.vmem [#allocation3], %s259
        %p261 = pneg %p60
        %p262 = pneg %p57
        %p263 = pneg %p81
        %p264 = pneg %p78
        %p265 = pneg %p102
        %p266 = pneg %p99
        %p267 = pneg %p123
        %p268 = pneg %p120
        %p269 = pneg %p144
        %p270 = pneg %p141
        %p271 = pneg %p172
        %p272 = pneg %p169
        %s273 = sand.u32 %s159, 1
        %s274 = scalar_lea.sflag [#allocation5], %s273
        %s275 = sand.u32 %s159, 1
        %s276 = smul.addr %s275, 8
        %s277 = scalar_lea.vmem [#allocation8], %s276
        %s278 = smul.u32 16, %s30
        %v280 = vld [vmem:[%s247] sm:$0xff]
        %v281 = vld [vmem:[%s247 + $0x8] sm:$0xff]
        %v282 = vld [vmem:[%s247 + $0x10] sm:$0xff]
        %v283 = vld [vmem:[%s247 + $0x18] sm:$0xff]
        %v284 = vld [vmem:[%s247 + $0x20] sm:$0xff]
        %v285 = vld [vmem:[%s247 + $0x28] sm:$0xff]
        %v286 = vld [vmem:[%s247 + $0x30] sm:$0xff]
        %v287 = vld [vmem:[%s247 + $0x38] sm:$0xff]
        %v288 = vld [vmem:[%s247 + $0x40] sm:$0xff]
        %v289 = vld [vmem:[%s247 + $0x48] sm:$0xff]
        %v290 = vld [vmem:[%s247 + $0x50] sm:$0xff]
        %v291 = vld [vmem:[%s247 + $0x58] sm:$0xff]
        %v292 = vld [vmem:[%s247 + $0x60] sm:$0xff]
        %v293 = vld [vmem:[%s247 + $0x68] sm:$0xff]
        %v294 = vld [vmem:[%s247 + $0x70] sm:$0xff]
        %v295 = vld [vmem:[%s247 + $0x78] sm:$0xff]
        %v296 = vpack.c.bf16 %v281, %v280
        %v297 = vpack.c.bf16 %v283, %v282
        %v298 = vpack.c.bf16 %v285, %v284
        %v299 = vpack.c.bf16 %v287, %v286
        %v300 = vpack.c.bf16 %v289, %v288
        %v301 = vpack.c.bf16 %v291, %v290
        %v302 = vpack.c.bf16 %v293, %v292
        %v303 = vpack.c.bf16 %v295, %v294
        %v304 = vld [vmem:[#allocation6] sm:$0xf]
        %v305 = vld [vmem:[#allocation6 + $0x4] sm:$0xf]
        %v306 = vld [vmem:[#allocation6 + $0x8] sm:$0xf]
        %v307 = vld [vmem:[#allocation6 + $0xc] sm:$0xf]
        %v308 = vld [vmem:[#allocation6 + $0x10] sm:$0xf]
        %v309 = vld [vmem:[#allocation6 + $0x14] sm:$0xf]
        %v310 = vld [vmem:[#allocation6 + $0x18] sm:$0xf]
        %v311 = vld [vmem:[#allocation6 + $0x1c] sm:$0xf]
        %v312 = vld [vmem:[#allocation6 + $0x20] sm:$0xf]
        %v313 = vld [vmem:[#allocation6 + $0x24] sm:$0xf]
        %v314 = vld [vmem:[#allocation6 + $0x28] sm:$0xf]
        %v315 = vld [vmem:[#allocation6 + $0x2c] sm:$0xf]
        %v316 = vld [vmem:[#allocation6 + $0x30] sm:$0xf]
        %v317 = vld [vmem:[#allocation6 + $0x34] sm:$0xf]
        %v318 = vld [vmem:[#allocation6 + $0x38] sm:$0xf]
        %v319 = vld [vmem:[#allocation6 + $0x3c] sm:$0xf]
        %v320 = vld [vmem:[%s2] sm:$0x1]
        %v322 = vlaneseq
        %v323 = vshrl.u32 %v322, 7
        %v324 = vsub.s32 0, %v323
        %v325 = vrot.slane %v320, %v324
        %v343 = vunpack.c.l.b16 %v304
        %v344 = vunpack.c.l.b16 %v305
        %v345 = vunpack.c.l.b16 %v306
        %v346 = vunpack.c.l.b16 %v307
        %v347 = vunpack.c.l.b16 %v308
        %v348 = vunpack.c.l.b16 %v309
        %v349 = vunpack.c.l.b16 %v310
        %v350 = vunpack.c.l.b16 %v311
        %v351 = vunpack.c.l.b16 %v312
        %v352 = vunpack.c.l.b16 %v313
        %v353 = vunpack.c.l.b16 %v314
        %v354 = vunpack.c.l.b16 %v315
        %v355 = vunpack.c.l.b16 %v316
        %v356 = vunpack.c.l.b16 %v317
        %v357 = vunpack.c.l.b16 %v318
        %v358 = vunpack.c.l.b16 %v319
        %v359 = vpack.c.b16 %v344, %v343
        %v360 = vpack.c.b16 %v346, %v345
        %v361 = vpack.c.b16 %v348, %v347
        %v362 = vpack.c.b16 %v350, %v349
        %v363 = vpack.c.b16 %v352, %v351
        %v364 = vpack.c.b16 %v354, %v353
        %v365 = vpack.c.b16 %v356, %v355
        %v366 = vpack.c.b16 %v358, %v357
        %375 = vmatprep.subr.bf16.mxu0 0
        %376 = vmatpush1.bf16.msra.mxu0 %v359
        %377 = vmatprep.subr.bf16.mxu0 0
        %378 = vmatpush1.bf16.msra.mxu0 %v360
        %379 = vmatprep.subr.bf16.mxu0 0
        %380 = vmatpush1.bf16.msra.mxu0 %v361
        %381 = vmatprep.subr.bf16.mxu0 0
        %382 = vmatpush1.bf16.msra.mxu0 %v362
        %383 = vmatprep.subr.bf16.mxu0 0
        %384 = vmatpush1.bf16.msra.mxu0 %v363
        %385 = vmatprep.subr.bf16.mxu0 0
        %386 = vmatpush1.bf16.msra.mxu0 %v364
        %387 = vmatprep.subr.bf16.mxu0 0
        %388 = vmatpush1.bf16.msra.mxu0 %v365
        %389 = vmatprep.subr.bf16.mxu0 0
        %390 = vmatpush1.bf16.msra.mxu0 %v366
        %391 = vmatprep.subr.bf16.mxu0 0
        %392 = vmatpush1.bf16.msra.mxu0 0
        %393 = vmatprep.subr.bf16.mxu0 0
        %394 = vmatpush1.bf16.msra.mxu0 0
        %395 = vmatprep.subr.bf16.mxu0 0
        %396 = vmatpush1.bf16.msra.mxu0 0
        %397 = vmatprep.subr.bf16.mxu0 0
        %398 = vmatpush1.bf16.msra.mxu0 0
        %399 = vmatprep.subr.bf16.mxu0 0
        %400 = vmatpush1.bf16.msra.mxu0 0
        %401 = vmatprep.subr.bf16.mxu0 0
        %402 = vmatpush1.bf16.msra.mxu0 0
        %403 = vmatprep.subr.bf16.mxu0 0
        %404 = vmatpush1.bf16.msra.mxu0 0
        %405 = vmatprep.subr.bf16.mxu0 0
        %406 = vmatpush1.bf16.msra.mxu0 0
        %407 = vmatprep.mubr.bf16.mxu0 0
        %408 = vmatmul.mubr.bf16.gmra.mrb[0].mxu0 %v296
        %v409 = vpop.f32.mrb[0].mxu0
        %v410 = vadd.f32 %v325, %v409
        %v411 = vpop.f32.mrb[0].mxu0
        %v412 = vpop.f32.mrb[0].mxu0
        %v413 = vadd.f32 %v325, %v412
        %v414 = vpop.f32.mrb[0].mxu0
        %415 = vmatprep.mubr.bf16.mxu0 0
        %416 = vmatmul.mubr.bf16.gmra.mrb[0].mxu0 %v297
        %v417 = vpop.f32.mrb[0].mxu0
        %v418 = vadd.f32 %v325, %v417
        %v419 = vpop.f32.mrb[0].mxu0
        %v420 = vpop.f32.mrb[0].mxu0
        %v421 = vadd.f32 %v325, %v420
        %v422 = vpop.f32.mrb[0].mxu0
        %423 = vmatprep.mubr.bf16.mxu0 0
        %424 = vmatmul.mubr.bf16.gmra.mrb[0].mxu0 %v298
        %v425 = vpop.f32.mrb[0].mxu0
        %v426 = vadd.f32 %v325, %v425
        %v427 = vpop.f32.mrb[0].mxu0
        %v428 = vpop.f32.mrb[0].mxu0
        %v429 = vadd.f32 %v325, %v428
        %v430 = vpop.f32.mrb[0].mxu0
        %431 = vmatprep.mubr.bf16.mxu0 0
        %432 = vmatmul.mubr.bf16.gmra.mrb[0].mxu0 %v299
        %v433 = vpop.f32.mrb[0].mxu0
        %v434 = vadd.f32 %v325, %v433
        %v435 = vpop.f32.mrb[0].mxu0
        %v436 = vpop.f32.mrb[0].mxu0
        %v437 = vadd.f32 %v325, %v436
        %v438 = vpop.f32.mrb[0].mxu0
        %439 = vmatprep.mubr.bf16.mxu0 0
        %440 = vmatmul.mubr.bf16.gmra.mrb[0].mxu0 %v300
        %v441 = vpop.f32.mrb[0].mxu0
        %v442 = vadd.f32 %v325, %v441
        %v443 = vpop.f32.mrb[0].mxu0
        %v444 = vpop.f32.mrb[0].mxu0
        %v445 = vadd.f32 %v325, %v444
        %v446 = vpop.f32.mrb[0].mxu0
        %447 = vmatprep.mubr.bf16.mxu0 0
        %448 = vmatmul.mubr.bf16.gmra.mrb[0].mxu0 %v301
        %v449 = vpop.f32.mrb[0].mxu0
        %v450 = vadd.f32 %v325, %v449
        %v451 = vpop.f32.mrb[0].mxu0
        %v452 = vpop.f32.mrb[0].mxu0
        %v453 = vadd.f32 %v325, %v452
        %v454 = vpop.f32.mrb[0].mxu0
        %455 = vmatprep.mubr.bf16.mxu0 0
        %456 = vmatmul.mubr.bf16.gmra.mrb[0].mxu0 %v302
        %v457 = vpop.f32.mrb[0].mxu0
        %v458 = vadd.f32 %v325, %v457
        %v459 = vpop.f32.mrb[0].mxu0
        %v460 = vpop.f32.mrb[0].mxu0
        %v461 = vadd.f32 %v325, %v460
        %v462 = vpop.f32.mrb[0].mxu0
        %463 = vmatprep.mubr.bf16.mxu0 0
        %464 = vmatmul.mubr.bf16.gmra.mrb[0].mxu0 %v303
        %v465 = vpop.f32.mrb[0].mxu0
        %v466 = vadd.f32 %v325, %v465
        %v467 = vpop.f32.mrb[0].mxu0
        %v468 = vpop.f32.mrb[0].mxu0
        %v469 = vadd.f32 %v325, %v468
        %v470 = vpop.f32.mrb[0].mxu0
        %471 = vdwg.mxu0
        %v472 = vtanh.pop %v410
        %v473 = vtanh.pop %v413
        %v474 = vtanh.pop %v418
        %v475 = vtanh.pop %v421
        %v476 = vtanh.pop %v426
        %v477 = vtanh.pop %v429
        %v478 = vtanh.pop %v434
        %v479 = vtanh.pop %v437
        %v480 = vtanh.pop %v442
        %v481 = vtanh.pop %v445
        %v482 = vtanh.pop %v450
        %v483 = vtanh.pop %v453
        %v484 = vtanh.pop %v458
        %v485 = vtanh.pop %v461
        %v486 = vtanh.pop %v466
        %v487 = vtanh.pop %v469
        %v488 = vld [vmem:[%s3] sm:$0xff]
        %v489 = vld [vmem:[#allocation2] sm:$0x1]
        %v491 = vlaneseq
        %v492 = vshrl.u32 %v491, 7
        %v493 = vsub.s32 0, %v492
        %v494 = vrot.slane %v489, %v493
        %495 = vset.pattern.permute.xlu0 0
        %496 = vperm.xlu0 %495, %v494
        %v497 = vpop.permute.xlu0 %496
        %499 = vmatprep.subr.mxu0 0.0
        %500 = vmatpush1.xpose.msra.mxu0 %v472
        %501 = vmatprep.subr.mxu0 0.0
        %502 = vmatpush1.xpose.msra.mxu0 %v473
        %503 = vmatprep.subr.mxu0 0.0
        %504 = vmatpush1.xpose.msra.mxu0 %v474
        %505 = vmatprep.subr.mxu0 0.0
        %506 = vmatpush1.xpose.msra.mxu0 %v475
        %507 = vmatprep.subr.mxu0 0.0
        %508 = vmatpush1.xpose.msra.mxu0 %v476
        %509 = vmatprep.subr.mxu0 0.0
        %510 = vmatpush1.xpose.msra.mxu0 %v477
        %511 = vmatprep.subr.mxu0 0.0
        %512 = vmatpush1.xpose.msra.mxu0 %v478
        %513 = vmatprep.subr.mxu0 0.0
        %514 = vmatpush1.xpose.msra.mxu0 %v479
        %515 = vmatprep.subr.mxu0 0.0
        %516 = vmatpush1.xpose.msra.mxu0 %v480
        %517 = vmatprep.subr.mxu0 0.0
        %518 = vmatpush1.xpose.msra.mxu0 %v481
        %519 = vmatprep.subr.mxu0 0.0
        %520 = vmatpush1.xpose.msra.mxu0 %v482
        %521 = vmatprep.subr.mxu0 0.0
        %522 = vmatpush1.xpose.msra.mxu0 %v483
        %523 = vmatprep.subr.mxu0 0.0
        %524 = vmatpush1.xpose.msra.mxu0 %v484
        %525 = vmatprep.subr.mxu0 0.0
        %526 = vmatpush1.xpose.msra.mxu0 %v485
        %527 = vmatprep.subr.mxu0 0.0
        %528 = vmatpush1.xpose.msra.mxu0 %v486
        %529 = vmatprep.subr.mxu0 0.0
        %530 = vmatpush1.xpose.msra.mxu0 %v487
        %531 = vmatprep.subr.mxu0 0.0
        %532 = vmatpush1.xpose.msra.mxu0 0.0
        %533 = vmatprep.subr.mxu0 0.0
        %534 = vmatpush1.xpose.msra.mxu0 0.0
        %535 = vmatprep.subr.mxu0 0.0
        %536 = vmatpush1.xpose.msra.mxu0 0.0
        %537 = vmatprep.subr.mxu0 0.0
        %538 = vmatpush1.xpose.msra.mxu0 0.0
        %539 = vmatprep.subr.mxu0 0.0
        %540 = vmatpush1.xpose.msra.mxu0 0.0
        %541 = vmatprep.subr.mxu0 0.0
        %542 = vmatpush1.xpose.msra.mxu0 0.0
        %543 = vmatprep.subr.mxu0 0.0
        %544 = vmatpush1.xpose.msra.mxu0 0.0
        %545 = vmatprep.subr.mxu0 0.0
        %546 = vmatpush1.xpose.msra.mxu0 0.0
        %547 = vmatprep.subr.mxu0 0.0
        %548 = vmatpush1.xpose.msra.mxu0 0.0
        %549 = vmatprep.subr.mxu0 0.0
        %550 = vmatpush1.xpose.msra.mxu0 0.0
        %551 = vmatprep.subr.mxu0 0.0
        %552 = vmatpush1.xpose.msra.mxu0 0.0
        %553 = vmatprep.subr.mxu0 0.0
        %554 = vmatpush1.xpose.msra.mxu0 0.0
        %555 = vmatprep.subr.mxu0 0.0
        %556 = vmatpush1.xpose.msra.mxu0 0.0
        %557 = vmatprep.subr.mxu0 0.0
        %558 = vmatpush1.xpose.msra.mxu0 0.0
        %559 = vmatprep.subr.mxu0 0.0
        %560 = vmatpush1.xpose.msra.mxu0 0.0
        %561 = vmatprep.subr.mxu0 0.0
        %562 = vmatpush1.xpose.msra.mxu0 0.0
        %563 = vmatprep.mubr.f32.mxu0 0.0
        %564 = vmatmul.mubr.f32.gmra.mrb[0].mxu0 %v488
        %v565 = vpop.f32.mrb[0].mxu0
        %v566 = vadd.f32 %v497, %v565
        %v567 = vpop.f32.mrb[0].mxu0
        %568 = vdwg.mxu0
        %vm569 = vcmp.gt.f32.partialorder %v566, 0.0
        %v570 = vsel %vm569, 1, 0
        %v571 = vcvt.s32.f32 %v570
        %p572 = scmp.eq.s32.totalorder %s29, 1
        %s573 = scalar_select %p572, 1, 0
        %s574 = scvt.s32.f32 %s573
        %s575 = smul.f32 %s574, 2.0
        %s576 = ssub.f32 1.0, %s575
        %v577 = vstv %s576
        %v578 = vmul.f32 %v577, %v571
        %v579 = vstv %s574
        %v580 = vadd.f32 %v579, %v578
        %581 = vst [vmem:[%s277] sm:$0xff] %v580
        %s582 = sand.u32 %s159, 1
        %s583 = scalar_lea.sflag [#allocation5], %s582
        %s584 = sand.u32 %s159, 1
        %s585 = smul.addr %s584, 8
        %s586 = scalar_lea.vmem [#allocation8], %s585
        // Predicated region
        $region49: #{tpu_custom_call.1} parent=39 // pred_check
          %p587 = pneg %p169
        $region50: #{tpu_custom_call.1} parent=39 // pred_check_branch
          %589 = sbr.rel (%p587) target = $region52
        $region51: #{tpu_custom_call.1} parent=39 // pred_region
          %s591 = ssub.s32 128, 128
          %592 = vsyncadd %s583, %s591
          %s593 = sadd.s32 %s30, %s29
          %s594 = smul.addr %s593, 128
          %s595 = scalar_lea.hbm %s5, %s594
          %s597 = sshll.u32 %s586, 4
          %s598 = int_to_ptr.vmem [resolvable:$true] %s597
          %600 = dma.vmem_to_hbm [thread:$0]  %s598, 128, %s595, %s583
        $region52: #{tpu_custom_call.1} parent=39 // pred_fallthru
          _
      $region40: #{tpu_custom_call.1} parent=5 // pred_fallthru
        _
      %p601 = scmp.le.s32.totalorder 2, %s20
      // Predicated region
      $region53: #{tpu_custom_call.1} parent=5 // pred_check
        %p602 = pneg %p601
      $region54: #{tpu_custom_call.1} parent=5 // pred_check_branch
        %604 = sbr.rel (%p602) target = $region56
      $region55: #{tpu_custom_call.1} parent=5 // pred_region
        %s605 = ssub.s32 %s20, 2
        // Predicated region
        $region57: #{tpu_custom_call.1} parent=55 // pred_check
          %p606 = pneg %p175
        $region58: #{tpu_custom_call.1} parent=55 // pred_check_branch
          %608 = sbr.rel (%p606) target = $region60
        $region59: #{tpu_custom_call.1} parent=55 // pred_region
          %s609 = sand.u32 %s160, 1
          %s610 = scalar_lea.sflag [#allocation5], %s609
          %s611 = sand.u32 %s160, 1
          %s612 = smul.addr %s611, 8
          %s613 = scalar_lea.vmem [#allocation8], %s612
          %614 = dma.done %s610, 128
        $region60: #{tpu_custom_call.1} parent=55 // pred_fallthru
          _
      $region56: #{tpu_custom_call.1} parent=5 // pred_fallthru
        _
    $region6: #{tpu_custom_call.1} parent=1 // loop_footer
      %s24 = sadd.s32 1, %s20
    $region7: #{tpu_custom_call.1} parent=1 // loop_footer_branch
      %19 = sbr.rel target = $region3
    $region8: #{tpu_custom_call.1} parent=1 // loop_exit
      _
    %615 = vsyncpa [#allocation4], 1
    %s616 = scalar_lea.sflag [#allocation4], 1
    %617 = vsyncpa %s616, 1
    %618 = vsyncpa [#allocation7], 1
    %619 = vsyncpa [#allocation5], 1
    %s620 = scalar_lea.sflag [#allocation5], 1
    %621 = vsyncpa %s620, 1

</llo_original>
